<compile_context>
chip_gen: v7x
topology: tpu7x:2x2x1
jax: 0.10.0
libtpu: 0.0.40
codegen_flags: <defaults>
</compile_context>

<pallas_src>
import functools

import jax
import jax.numpy as jnp
from jax import lax
from jax.experimental import pallas as pl
from jax.experimental.pallas import tpu as pltpu


def block_kernel(x_ref, wdw_ref, b1_ref, wbig_ref, b2_ref, o_ref, *, cin):
    # x_ref  : (N, H+2, W*Cin)   H-padded input, (w, ci) flattened on the lane axis
    # wdw_ref: (3, 3, W*Cin)     depthwise weights, BN1-scale folded, W-edge lanes
    #                            of the kw=0 / kw=2 taps zeroed (conv zero padding)
    # b1     : (1, W*Cin)        folded BN1 bias (tiled over W)
    # wbig   : (W*Cin, W*Cout)   bf16 block-diagonal pointwise weight = kron(I_W, Wpw*s2)
    # b2     : (1, W*Cout)       folded BN2 bias (tiled over W)
    # o_ref  : (N, Hb, W*Cout)   one H-strip of output, lane-dense
    hi = pl.program_id(0)
    _, _, WC = x_ref.shape
    _, Hb, _ = o_ref.shape

    row0 = hi * Hb
    if Hb % 8 == 0:
        row0 = pl.multiple_of(row0, 8)
    xs = x_ref[:, pl.ds(row0, Hb + 2), :]                     # (N, Hb+2, WC)

    # W-neighbour taps: roll the flattened (w, c) lane axis by one pixel (= cin
    # lanes) on the XLU.  No masking needed: the wrapped lanes are multiplied by
    # weight lanes that were zeroed host-side (the conv zero padding).
    x_l = pltpu.roll(xs, shift=cin, axis=2)                   # x[w-1]
    x_r = pltpu.roll(xs, shift=WC - cin, axis=2)              # x[w+1]

    wdw = wdw_ref[...]                                        # (3, 3, WC)

    # --- depthwise 3x3 (BN1 scale pre-folded): 9 lane-dense VPU MACs ---
    # TODO(synk): at larger N/Hb, accumulate per sublane-aligned row group
    # (small fori_loop) so xs/x_l/x_r aren't all live at full height (vreg spill).
    acc = x_l[:, 0:Hb, :] * wdw[0, 0]
    acc = acc + xs[:, 0:Hb, :] * wdw[0, 1]
    acc = acc + x_r[:, 0:Hb, :] * wdw[0, 2]
    acc = acc + x_l[:, 1:Hb + 1, :] * wdw[1, 0]
    acc = acc + xs[:, 1:Hb + 1, :] * wdw[1, 1]
    acc = acc + x_r[:, 1:Hb + 1, :] * wdw[1, 2]
    acc = acc + x_l[:, 2:Hb + 2, :] * wdw[2, 0]
    acc = acc + xs[:, 2:Hb + 2, :] * wdw[2, 1]
    acc = acc + x_r[:, 2:Hb + 2, :] * wdw[2, 2]

    # --- BN1 bias (scale already folded into wdw) + ReLU ---
    y1 = jnp.maximum(acc + b1_ref[0], 0.0)

    # --- pointwise 1x1 conv as a block-diagonal bf16 MXU matmul (f32 acc) ---
    # K = W*Cin = 128 dense lanes; keeps the (w, c) interleaved layout, so the only
    # reshapes are trivial leading-dim merges/splits.
    y1 = y1.reshape(-1, WC).astype(wbig_ref.dtype)            # (N*Hb, WC) bf16
    y2 = jnp.dot(y1, wbig_ref[...], preferred_element_type=jnp.float32)  # (N*Hb, W*Cout)

    # --- BN2 bias (scale folded into wbig columns) + ReLU; lane-dense store ---
    y2 = jnp.maximum(y2 + b2_ref[0], 0.0)
    o_ref[...] = y2.reshape(o_ref.shape).astype(o_ref.dtype)


def _default_n_strips():
    # v7x has 2 TensorCores per chip -> 2 parallel H-strips.  v5e/v6e have a
    # single TC, where extra grid steps are pure per-step overhead plus
    # redundant halo/roll setup -> process the whole H in one step.
    try:
        kind = jax.devices()[0].device_kind.lower()
    except Exception:
        return 1
    return 2 if "7" in kind else 1


def prepare_block_params(w_dw, w_pw, scale1, bias1, scale2, bias2, *, W):
    """One-time (module-init) weight/BN preprocessing, hoisted out of the
    per-call path.  BN scales are folded into the conv weights; only bias+ReLU
    stays in the kernel."""
    Cin, Cout = w_dw.shape[0], w_pw.shape[0]
    WC, WCo = W * Cin, W * Cout
    # Lane-dense design assumption (full-width vld/vst).
    assert WC % 128 == 0 and WCo % 128 == 0, (WC, WCo)
    # kron(I_W, Wpw) is O(W^2*Cin*Cout): fine while W*Cin is a single lane tile,
    # a VMEM/HBM liability at real MobileNet widths -> refuse to silently inflate.
    assert WC <= 256 and WCo <= 512, (
        "block-diagonal pointwise weight too large; use a Cin-contracted "
        "(N*H*W, Cin) x (Cin, Cout) matmul layout for larger W*Cin")
    # TODO(synk): add the Cin-contracted pointwise fallback path for large W*Cin.

    # Depthwise weights -> (kh, kw, c), fold BN1 scale per channel, tile over W
    # so lane (w*Cin + c) sees the weight of channel c.
    wdw = jnp.transpose(w_dw[:, 0, :, :], (1, 2, 0)) * scale1[None, None, :]
    wdw_t = jnp.tile(wdw, (1, 1, W))                               # (3, 3, WC)
    # Bake the conv zero-padding along W into the edge lanes of the w-1 / w+1
    # taps (replaces the former in-kernel iota/where masking of the rolls).
    lane = jnp.arange(WC)
    mask_l = (lane >= Cin).astype(wdw_t.dtype)        # w==0 has no left neighbour
    mask_r = (lane < WC - Cin).astype(wdw_t.dtype)    # w==W-1 has no right neighbour
    wdw_t = wdw_t.at[:, 0, :].set(wdw_t[:, 0, :] * mask_l)
    wdw_t = wdw_t.at[:, 2, :].set(wdw_t[:, 2, :] * mask_r)

    # Pointwise weight (Cin, Cout), fold BN2 scale per output column, expand to
    # block-diagonal kron(I_W, Wpw) so the matmul keeps the interleaved (w, c)
    # lane layout; store in bf16 for MXU throughput / half the DMA+VMEM.
    wpw = jnp.transpose(w_pw[:, :, 0, 0], (1, 0)) * scale2[None, :]
    wpw_big = jnp.kron(jnp.eye(W, dtype=wpw.dtype), wpw).astype(jnp.bfloat16)

    b1 = jnp.tile(bias1, W).reshape(1, WC).astype(jnp.float32)
    b2 = jnp.tile(bias2, W).reshape(1, WCo).astype(jnp.float32)
    return dict(wdw=wdw_t, b1=b1, wpw=wpw_big, b2=b2, cin=Cin, cout=Cout, W=W)


def block_forward_flat(x_flat, params, *, n_strips=None):
    """x_flat: (N, H, W*Cin) lane-dense.  Returns (N, H, W*Cout) lane-dense."""
    N, H, WC = x_flat.shape
    Cin, Cout, W = params["cin"], params["cout"], params["W"]
    assert WC == W * Cin, (WC, W, Cin)
    WCo = W * Cout

    if n_strips is None:
        n_strips = _default_n_strips()
    if H % n_strips or ((H // n_strips) % 8 and H // n_strips != H):
        n_strips = 1
    Hb = H // n_strips

    # H halo only (W halo is handled in-kernel with rolls -> no W padding pass).
    x_pad = jnp.pad(x_flat, ((0, 0), (1, 1), (0, 0)))              # (N, H+2, WC)
    Hp = H + 2

    out = pl.pallas_call(
        functools.partial(block_kernel, cin=Cin),
        out_shape=jax.ShapeDtypeStruct((N, H, WCo), x_flat.dtype),
        grid_spec=pltpu.PrefetchScalarGridSpec(
            num_scalar_prefetch=0,
            grid=(n_strips,),
            in_specs=[
                # Full padded input stays resident across strips (constant
                # index_map) -- fine at ~18 KB.
                # TODO(synk): at larger N/H/C, switch to per-strip (Hb+2)-row halo
                # windows and more strips (multiples of 2 on v7x) to stay inside
                # v7x's 64 MiB VMEM; constants could then also be single-buffered
                # (pl.Buffered(1)) since their index never changes.
                pl.BlockSpec((N, Hp, WC), lambda hi: (0, 0, 0)),
                pl.BlockSpec((3, 3, WC), lambda hi: (0, 0, 0)),
                pl.BlockSpec((1, WC), lambda hi: (0, 0)),
                pl.BlockSpec((WC, WCo), lambda hi: (0, 0)),
                pl.BlockSpec((1, WCo), lambda hi: (0, 0)),
            ],
            out_specs=pl.BlockSpec((N, Hb, WCo), lambda hi: (0, hi, 0)),
        ),
        compiler_params=pltpu.CompilerParams(
            dimension_semantics=("parallel",)),
    )(x_pad, params["wdw"], params["b1"], params["wpw"], params["b2"])
    return out


def block_forward(x_nchw, params, *, n_strips=None):
    """NCHW adapter for parity with the PyTorch module.  In a real pipeline,
    feed/consume the lane-dense (N, H, W*C) layout directly via
    block_forward_flat to avoid the two wrapper-side HBM transposes."""
    N, Cin, H, W = x_nchw.shape
    x_flat = jnp.transpose(x_nchw, (0, 2, 3, 1)).reshape(N, H, W * Cin)
    out = block_forward_flat(x_flat, params, n_strips=n_strips)
    Cout = params["cout"]
    return jnp.transpose(out.reshape(N, H, W, Cout), (0, 3, 1, 2))


def reference_forward(x_nchw, w_dw, w_pw, scale1, bias1, scale2, bias2):
    """Pure-JAX reference (lax convs, f32) for correctness check."""
    Cin = x_nchw.shape[1]
    y = lax.conv_general_dilated(
        x_nchw, w_dw, window_strides=(1, 1), padding=((1, 1), (1, 1)),
        dimension_numbers=("NCHW", "OIHW", "NCHW"), feature_group_count=Cin)
    y = jnp.maximum(y * scale1[None, :, None, None] + bias1[None, :, None, None], 0.0)
    y = lax.conv_general_dilated(
        y, w_pw, window_strides=(1, 1), padding="VALID",
        dimension_numbers=("NCHW", "OIHW", "NCHW"))
    y = jnp.maximum(y * scale2[None, :, None, None] + bias2[None, :, None, None], 0.0)
    return y


if __name__ == "__main__":
    N, Cin, Cout, H, W = 2, 8, 16, 16, 16
    eps = 1e-5

    key = jax.random.PRNGKey(0)
    k_x, k_dw, k_pw = jax.random.split(key, 3)

    x = jax.random.normal(k_x, (N, Cin, H, W), dtype=jnp.float32)
    # conv weights (PyTorch layouts): depthwise (Cin,1,3,3), pointwise (Cout,Cin,1,1)
    w_dw = jax.random.normal(k_dw, (Cin, 1, 3, 3), dtype=jnp.float32) * 0.3
    w_pw = jax.random.normal(k_pw, (Cout, Cin, 1, 1), dtype=jnp.float32) * 0.3

    # deterministic BatchNorm parameters (eval mode, folded to scale/bias)
    gamma1 = 1.0 + 0.10 * jnp.arange(Cin, dtype=jnp.float32)
    beta1 = 0.05 * jnp.arange(Cin, dtype=jnp.float32)
    mean1 = 0.01 * jnp.arange(Cin, dtype=jnp.float32)
    var1 = 1.0 + 0.02 * jnp.arange(Cin, dtype=jnp.float32)
    gamma2 = 1.0 + 0.05 * jnp.arange(Cout, dtype=jnp.float32)
    beta2 = -0.03 * jnp.arange(Cout, dtype=jnp.float32)
    mean2 = 0.02 * jnp.arange(Cout, dtype=jnp.float32)
    var2 = 1.0 + 0.01 * jnp.arange(Cout, dtype=jnp.float32)

    scale1 = gamma1 / jnp.sqrt(var1 + eps)
    bias1 = beta1 - mean1 * scale1
    scale2 = gamma2 / jnp.sqrt(var2 + eps)
    bias2 = beta2 - mean2 * scale2

    # One-time weight/BN preprocessing (hoisted out of the per-call path).
    params = prepare_block_params(w_dw, w_pw, scale1, bias1, scale2, bias2, W=W)

    out = block_forward(x, params)
    out = jax.block_until_ready(out)

    ref = reference_forward(x, w_dw, w_pw, scale1, bias1, scale2, bias2)
    assert out.shape == (N, Cout, H, W), out.shape
    # Tolerance loosened (vs pure-f32) because the pointwise matmul runs in bf16
    # on the MXU with an f32 accumulator.
    assert jnp.allclose(out, ref, rtol=5e-2, atol=5e-2), float(jnp.max(jnp.abs(out - ref)))

    print("KERNEL_OK")
</pallas_src>

<mosaic_0001>
module attributes {stable_mosaic.version = 11 : i64} {
  func.func @block_kernel(%arg0: i32, %arg1: memref<2x18x128xf32, #tpu.memory_space<vmem>>, %arg2: memref<3x3x128xf32, #tpu.memory_space<vmem>>, %arg3: memref<1x128xf32, #tpu.memory_space<vmem>>, %arg4: memref<128x256xbf16, #tpu.memory_space<vmem>>, %arg5: memref<1x256xf32, #tpu.memory_space<vmem>>, %arg6: memref<2x16x256xf32, #tpu.memory_space<vmem>>) attributes {dimension_semantics = [#tpu.dimension_semantics<parallel>], iteration_bounds = array<i64: 1>, scalar_prefetch = 0 : i64, scratch_operands = 0 : i64, tpu.core_type = #tpu.core_type<tc>, window_params = [{pipeline_mode = #tpu.pipeline_mode<synchronous>, transform_indices = @transform_0, window_bounds = array<i64: 2, 18, 128>}, {pipeline_mode = #tpu.pipeline_mode<synchronous>, transform_indices = @transform_1, window_bounds = array<i64: 3, 3, 128>}, {pipeline_mode = #tpu.pipeline_mode<synchronous>, transform_indices = @transform_2, window_bounds = array<i64: 1, 128>}, {pipeline_mode = #tpu.pipeline_mode<synchronous>, transform_indices = @transform_3, window_bounds = array<i64: 128, 256>}, {pipeline_mode = #tpu.pipeline_mode<synchronous>, transform_indices = @transform_4, window_bounds = array<i64: 1, 256>}, {transform_indices = @transform_5, window_bounds = array<i64: 2, 16, 256>}]} {
    %c16_i32 = arith.constant 16 : i32
    %0 = arith.muli %arg0, %c16_i32 : i32
    %1 = tpu.assume_multiple %0, 8 : i32
    %c0 = arith.constant 0 : index
    %2 = arith.index_cast %1 : i32 to index
    %c0_0 = arith.constant 0 : index
    %3 = vector.load %arg1[%c0, %2, %c0_0] : memref<2x18x128xf32, #tpu.memory_space<vmem>>, vector<2x18x128xf32>
    %c8_i32 = arith.constant 8 : i32
    %4 = tpu.dynamic_rotate %3 by %c8_i32 dim 2 : vector<2x18x128xf32>, i32 -> vector<2x18x128xf32>
    %c120_i32 = arith.constant 120 : i32
    %5 = tpu.dynamic_rotate %3 by %c120_i32 dim 2 : vector<2x18x128xf32>, i32 -> vector<2x18x128xf32>
    %c0_1 = arith.constant 0 : index
    %c0_2 = arith.constant 0 : index
    %c0_3 = arith.constant 0 : index
    %6 = vector.load %arg2[%c0_1, %c0_2, %c0_3] : memref<3x3x128xf32, #tpu.memory_space<vmem>>, vector<3x3x128xf32>
    %7 = vector.extract_strided_slice %4 {offsets = [0, 0, 0], sizes = [2, 16, 128], strides = [1, 1, 1]} : vector<2x18x128xf32> to vector<2x16x128xf32>
    %8 = vector.extract_strided_slice %6 {offsets = [0, 0, 0], sizes = [1, 1, 128], strides = [1, 1, 1]} : vector<3x3x128xf32> to vector<1x1x128xf32>
    %9 = vector.shape_cast %8 : vector<1x1x128xf32> to vector<128xf32>
    %10 = vector.shape_cast %9 : vector<128xf32> to vector<1x1x128xf32>
    %11 = vector.broadcast %10 : vector<1x1x128xf32> to vector<2x16x128xf32>
    %12 = arith.mulf %7, %11 : vector<2x16x128xf32>
    %13 = vector.extract_strided_slice %3 {offsets = [0, 0, 0], sizes = [2, 16, 128], strides = [1, 1, 1]} : vector<2x18x128xf32> to vector<2x16x128xf32>
    %14 = vector.extract_strided_slice %6 {offsets = [0, 1, 0], sizes = [1, 1, 128], strides = [1, 1, 1]} : vector<3x3x128xf32> to vector<1x1x128xf32>
    %15 = vector.shape_cast %14 : vector<1x1x128xf32> to vector<128xf32>
    %16 = vector.shape_cast %15 : vector<128xf32> to vector<1x1x128xf32>
    %17 = vector.broadcast %16 : vector<1x1x128xf32> to vector<2x16x128xf32>
    %18 = arith.mulf %13, %17 : vector<2x16x128xf32>
    %19 = arith.addf %12, %18 : vector<2x16x128xf32>
    %20 = vector.extract_strided_slice %5 {offsets = [0, 0, 0], sizes = [2, 16, 128], strides = [1, 1, 1]} : vector<2x18x128xf32> to vector<2x16x128xf32>
    %21 = vector.extract_strided_slice %6 {offsets = [0, 2, 0], sizes = [1, 1, 128], strides = [1, 1, 1]} : vector<3x3x128xf32> to vector<1x1x128xf32>
    %22 = vector.shape_cast %21 : vector<1x1x128xf32> to vector<128xf32>
    %23 = vector.shape_cast %22 : vector<128xf32> to vector<1x1x128xf32>
    %24 = vector.broadcast %23 : vector<1x1x128xf32> to vector<2x16x128xf32>
    %25 = arith.mulf %20, %24 : vector<2x16x128xf32>
    %26 = arith.addf %19, %25 : vector<2x16x128xf32>
    %27 = vector.extract_strided_slice %4 {offsets = [0, 1, 0], sizes = [2, 16, 128], strides = [1, 1, 1]} : vector<2x18x128xf32> to vector<2x16x128xf32>
    %28 = vector.extract_strided_slice %6 {offsets = [1, 0, 0], sizes = [1, 1, 128], strides = [1, 1, 1]} : vector<3x3x128xf32> to vector<1x1x128xf32>
    %29 = vector.shape_cast %28 : vector<1x1x128xf32> to vector<128xf32>
    %30 = vector.shape_cast %29 : vector<128xf32> to vector<1x1x128xf32>
    %31 = vector.broadcast %30 : vector<1x1x128xf32> to vector<2x16x128xf32>
    %32 = arith.mulf %27, %31 : vector<2x16x128xf32>
    %33 = arith.addf %26, %32 : vector<2x16x128xf32>
    %34 = vector.extract_strided_slice %3 {offsets = [0, 1, 0], sizes = [2, 16, 128], strides = [1, 1, 1]} : vector<2x18x128xf32> to vector<2x16x128xf32>
    %35 = vector.extract_strided_slice %6 {offsets = [1, 1, 0], sizes = [1, 1, 128], strides = [1, 1, 1]} : vector<3x3x128xf32> to vector<1x1x128xf32>
    %36 = vector.shape_cast %35 : vector<1x1x128xf32> to vector<128xf32>
    %37 = vector.shape_cast %36 : vector<128xf32> to vector<1x1x128xf32>
    %38 = vector.broadcast %37 : vector<1x1x128xf32> to vector<2x16x128xf32>
    %39 = arith.mulf %34, %38 : vector<2x16x128xf32>
    %40 = arith.addf %33, %39 : vector<2x16x128xf32>
    %41 = vector.extract_strided_slice %5 {offsets = [0, 1, 0], sizes = [2, 16, 128], strides = [1, 1, 1]} : vector<2x18x128xf32> to vector<2x16x128xf32>
    %42 = vector.extract_strided_slice %6 {offsets = [1, 2, 0], sizes = [1, 1, 128], strides = [1, 1, 1]} : vector<3x3x128xf32> to vector<1x1x128xf32>
    %43 = vector.shape_cast %42 : vector<1x1x128xf32> to vector<128xf32>
    %44 = vector.shape_cast %43 : vector<128xf32> to vector<1x1x128xf32>
    %45 = vector.broadcast %44 : vector<1x1x128xf32> to vector<2x16x128xf32>
    %46 = arith.mulf %41, %45 : vector<2x16x128xf32>
    %47 = arith.addf %40, %46 : vector<2x16x128xf32>
    %48 = vector.extract_strided_slice %4 {offsets = [0, 2, 0], sizes = [2, 16, 128], strides = [1, 1, 1]} : vector<2x18x128xf32> to vector<2x16x128xf32>
    %49 = vector.extract_strided_slice %6 {offsets = [2, 0, 0], sizes = [1, 1, 128], strides = [1, 1, 1]} : vector<3x3x128xf32> to vector<1x1x128xf32>
    %50 = vector.shape_cast %49 : vector<1x1x128xf32> to vector<128xf32>
    %51 = vector.shape_cast %50 : vector<128xf32> to vector<1x1x128xf32>
    %52 = vector.broadcast %51 : vector<1x1x128xf32> to vector<2x16x128xf32>
    %53 = arith.mulf %48, %52 : vector<2x16x128xf32>
    %54 = arith.addf %47, %53 : vector<2x16x128xf32>
    %55 = vector.extract_strided_slice %3 {offsets = [0, 2, 0], sizes = [2, 16, 128], strides = [1, 1, 1]} : vector<2x18x128xf32> to vector<2x16x128xf32>
    %56 = vector.extract_strided_slice %6 {offsets = [2, 1, 0], sizes = [1, 1, 128], strides = [1, 1, 1]} : vector<3x3x128xf32> to vector<1x1x128xf32>
    %57 = vector.shape_cast %56 : vector<1x1x128xf32> to vector<128xf32>
    %58 = vector.shape_cast %57 : vector<128xf32> to vector<1x1x128xf32>
    %59 = vector.broadcast %58 : vector<1x1x128xf32> to vector<2x16x128xf32>
    %60 = arith.mulf %55, %59 : vector<2x16x128xf32>
    %61 = arith.addf %54, %60 : vector<2x16x128xf32>
    %62 = vector.extract_strided_slice %5 {offsets = [0, 2, 0], sizes = [2, 16, 128], strides = [1, 1, 1]} : vector<2x18x128xf32> to vector<2x16x128xf32>
    %63 = vector.extract_strided_slice %6 {offsets = [2, 2, 0], sizes = [1, 1, 128], strides = [1, 1, 1]} : vector<3x3x128xf32> to vector<1x1x128xf32>
    %64 = vector.shape_cast %63 : vector<1x1x128xf32> to vector<128xf32>
    %65 = vector.shape_cast %64 : vector<128xf32> to vector<1x1x128xf32>
    %66 = vector.broadcast %65 : vector<1x1x128xf32> to vector<2x16x128xf32>
    %67 = arith.mulf %62, %66 : vector<2x16x128xf32>
    %68 = arith.addf %61, %67 : vector<2x16x128xf32>
    %c0_4 = arith.constant 0 : index
    %c0_5 = arith.constant 0 : index
    %69 = vector.load %arg3[%c0_4, %c0_5] : memref<1x128xf32, #tpu.memory_space<vmem>>, vector<1x128xf32>
    %70 = vector.shape_cast %69 : vector<1x128xf32> to vector<128xf32>
    %71 = vector.shape_cast %70 : vector<128xf32> to vector<1x1x128xf32>
    %72 = vector.broadcast %71 : vector<1x1x128xf32> to vector<2x16x128xf32>
    %73 = arith.addf %68, %72 : vector<2x16x128xf32>
    %cst = arith.constant 0.000000e+00 : f32
    %74 = vector.broadcast %cst : f32 to vector<2x16x128xf32>
    %75 = arith.maximumf %73, %74 : vector<2x16x128xf32>
    %76 = vector.shape_cast %75 : vector<2x16x128xf32> to vector<32x128xf32>
    %77 = arith.truncf %76 : vector<32x128xf32> to vector<32x128xbf16>
    %c0_6 = arith.constant 0 : index
    %c0_7 = arith.constant 0 : index
    %78 = vector.load %arg4[%c0_6, %c0_7] : memref<128x256xbf16, #tpu.memory_space<vmem>>, vector<128x256xbf16>
    %cst_8 = arith.constant dense<0.000000e+00> : vector<32x256xf32>
    %79 = tpu.matmul %77, %78, %cst_8 {dimension_numbers = #tpu.dot_dimension_numbers<[1], [0], [0], [1], [0, 0, 1, 1], [], []>} : vector<32x128xbf16>, vector<128x256xbf16>, vector<32x256xf32> -> vector<32x256xf32>
    %c0_9 = arith.constant 0 : index
    %c0_10 = arith.constant 0 : index
    %80 = vector.load %arg5[%c0_9, %c0_10] : memref<1x256xf32, #tpu.memory_space<vmem>>, vector<1x256xf32>
    %81 = vector.shape_cast %80 : vector<1x256xf32> to vector<256xf32>
    %82 = vector.shape_cast %81 : vector<256xf32> to vector<1x256xf32>
    %83 = vector.broadcast %82 : vector<1x256xf32> to vector<32x256xf32>
    %84 = arith.addf %79, %83 : vector<32x256xf32>
    %cst_11 = arith.constant 0.000000e+00 : f32
    %85 = vector.broadcast %cst_11 : f32 to vector<32x256xf32>
    %86 = arith.maximumf %84, %85 : vector<32x256xf32>
    %87 = vector.shape_cast %86 : vector<32x256xf32> to vector<2x16x256xf32>
    %c0_12 = arith.constant 0 : index
    %c0_13 = arith.constant 0 : index
    %c0_14 = arith.constant 0 : index
    %88 = vector.load %arg6[%c0_12, %c0_13, %c0_14] : memref<2x16x256xf32, #tpu.memory_space<vmem>>, vector<2x16x256xf32>
    tpu.vector_store %arg6[%c0_12, %c0_13, %c0_14], %87 {strides = array<i32>} : memref<2x16x256xf32, #tpu.memory_space<vmem>>, vector<2x16x256xf32>,
    return
  }
  func.func @transform_0(%arg0: i32) -> (i32, i32, i32) {
    %c0_i32 = arith.constant 0 : i32
    %c0_i32_0 = arith.constant 0 : i32
    %c0_i32_1 = arith.constant 0 : i32
    %c0_i32_2 = arith.constant 0 : i32
    return %c0_i32, %c0_i32_0, %c0_i32_1 : i32, i32, i32
  }
  func.func @transform_1(%arg0: i32) -> (i32, i32, i32) {
    %c0_i32 = arith.constant 0 : i32
    %c0_i32_0 = arith.constant 0 : i32
    %c0_i32_1 = arith.constant 0 : i32
    %c0_i32_2 = arith.constant 0 : i32
    return %c0_i32, %c0_i32_0, %c0_i32_1 : i32, i32, i32
  }
  func.func @transform_2(%arg0: i32) -> (i32, i32) {
    %c0_i32 = arith.constant 0 : i32
    %c0_i32_0 = arith.constant 0 : i32
    %c0_i32_1 = arith.constant 0 : i32
    return %c0_i32, %c0_i32_0 : i32, i32
  }
  func.func @transform_3(%arg0: i32) -> (i32, i32) {
    %c0_i32 = arith.constant 0 : i32
    %c0_i32_0 = arith.constant 0 : i32
    %c0_i32_1 = arith.constant 0 : i32
    return %c0_i32, %c0_i32_0 : i32, i32
  }
  func.func @transform_4(%arg0: i32) -> (i32, i32) {
    %c0_i32 = arith.constant 0 : i32
    %c0_i32_0 = arith.constant 0 : i32
    %c0_i32_1 = arith.constant 0 : i32
    return %c0_i32, %c0_i32_0 : i32, i32
  }
  func.func @transform_5(%arg0: i32) -> (i32, i32, i32) {
    %c0_i32 = arith.constant 0 : i32
    %c0_i32_0 = arith.constant 0 : i32
    %c0_i32_1 = arith.constant 0 : i32
    return %c0_i32, %arg0, %c0_i32_0 : i32, i32, i32
  }
}

</mosaic_0001>

<llo_original>
// kernel: tpu_custom_call.1
$region0: #{tpu_custom_call.1}
  #allocation0 [shape = 'u32[]', space=smem, size = 0x4, offset = 0x4, fixed_abs, tag = 'smem constant byte address 0x4 - core index']
  #allocation1 [shape = 'u32[144,128]{1,0:T(1,128)}', space=vmem, size = 0x12000, scoped, tag = 'internal scratch']
  %s0 = inlined_call_operand.vmem [shape: f32[2,18,128], index: 0, kind: input, shape index: {}]
  %s1 = inlined_call_operand.vmem [shape: f32[3,3,128], index: 1, kind: input, shape index: {}]
  %s2 = inlined_call_operand.vmem [shape: f32[1,128], index: 2, kind: input, shape index: {}]
  %s3 = inlined_call_operand.hbm [shape: bf16[128,256], index: 3, kind: input, shape index: {}]
  %s4 = inlined_call_operand.vmem [shape: f32[1,256], index: 4, kind: input, shape index: {}]
  %s5 = inlined_call_operand.hbm [shape: f32[2,16,256], index: 5, kind: output, shape index: {}]
  %s6 = sld [smem:[#allocation0]]
  $region34: #{tpu_custom_call.1} parent=0
    _
  %s8 = ssub.s32 1, %s6
  %s9 = scalar_select 0, %s8, %s6
  $region1: #{tpu_custom_call.1} parent=0
    #allocation2 [shape = 'u8[65536]{0}', space=vmem, size = 0x10000, scoped, tag = 'input window, operand 3, single buffered']
    #allocation3 [shape = 's32[1]{0}', space=sflag, size = 0x4, scoped, tag = 'scoped memory for tpu_custom_call.1']
    #allocation4 [shape = 's32[1]{0}', space=sflag, size = 0x4, scoped, tag = 'scoped memory for tpu_custom_call.1']
    #allocation5 [shape = 'u8[32768]{0}', space=vmem, size = 0x8000, scoped, tag = 'output window, operand 0, single buffered']
    %10 = vsyncpa [#allocation3], 0
    %11 = vsyncpa [#allocation4], 0
    // Predicated region
    $region2: #{tpu_custom_call.1} parent=1 // pred_check
      _
    $region3: #{tpu_custom_call.1} parent=1 // pred_check_branch
      %13 = sbr.rel (0) target = $region5
    $region4: #{tpu_custom_call.1} parent=1 // pred_region
      _
    $region5: #{tpu_custom_call.1} parent=1 // pred_fallthru
      _
    // Predicated region
    $region6: #{tpu_custom_call.1} parent=1 // pred_check
      _
    $region7: #{tpu_custom_call.1} parent=1 // pred_check_branch
      %15 = sbr.rel (0) target = $region9
    $region8: #{tpu_custom_call.1} parent=1 // pred_region
      _
    $region9: #{tpu_custom_call.1} parent=1 // pred_fallthru
      _
    // Predicated region
    $region10: #{tpu_custom_call.1} parent=1 // pred_check
      _
    $region11: #{tpu_custom_call.1} parent=1 // pred_check_branch
      %17 = sbr.rel (0) target = $region13
    $region12: #{tpu_custom_call.1} parent=1 // pred_region
      _
    $region13: #{tpu_custom_call.1} parent=1 // pred_fallthru
      _
    // Predicated region
    $region14: #{tpu_custom_call.1} parent=1 // pred_check
      _
    $region15: #{tpu_custom_call.1} parent=1 // pred_check_branch
      %19 = sbr.rel (0) target = $region17
    $region16: #{tpu_custom_call.1} parent=1 // pred_region
      %s21 = ssub.s32 2048, 2048
      %22 = vsyncadd [#allocation3], %s21
      %s23 = sshll.u32 [#allocation2], 4
      %s24 = int_to_ptr.vmem [resolvable:$true] %s23
      %29 = dma.hbm_to_vmem [thread:$0]  %s3, 2048, %s24, [#allocation3], 128, 128, 8
    $region17: #{tpu_custom_call.1} parent=1 // pred_fallthru
      _
    // Predicated region
    $region18: #{tpu_custom_call.1} parent=1 // pred_check
      _
    $region19: #{tpu_custom_call.1} parent=1 // pred_check_branch
      %31 = sbr.rel (0) target = $region21
    $region20: #{tpu_custom_call.1} parent=1 // pred_region
      _
    $region21: #{tpu_custom_call.1} parent=1 // pred_fallthru
      _
    // Predicated region
    $region22: #{tpu_custom_call.1} parent=1 // pred_check
      _
    $region23: #{tpu_custom_call.1} parent=1 // pred_check_branch
      %33 = sbr.rel (0) target = $region25
    $region24: #{tpu_custom_call.1} parent=1 // pred_region
      %34 = dma.done [#allocation3], 2048
    $region25: #{tpu_custom_call.1} parent=1 // pred_fallthru
      _
    %s36 = smul.u32 0, 16
    %s37 = scalar_lea.vmem %s0, %s36
    %v38 = vld [vmem:[%s37] sm:$0xff]
    %v39 = vld [vmem:[%s37 + $0x8] sm:$0xff]
    %v40 = vld [vmem:[%s37 + $0x10] sm:$0x3]
    %v41 = vld [vmem:[%s37 + $0x18] sm:$0xff]
    %v42 = vld [vmem:[%s37 + $0x20] sm:$0xff]
    %v43 = vld [vmem:[%s37 + $0x28] sm:$0x3]
    %44 = vrot.lane.b32.xlu0 %v38, 8
    %v45 = vpop.permute.xlu0 %44
    %46 = vrot.lane.b32.xlu0 %v39, 8
    %v47 = vpop.permute.xlu0 %46
    %48 = vrot.lane.b32.xlu0 %v40, 8
    %v49 = vpop.permute.xlu0 %48
    %50 = vrot.lane.b32.xlu0 %v41, 8
    %v51 = vpop.permute.xlu0 %50
    %52 = vrot.lane.b32.xlu0 %v42, 8
    %v53 = vpop.permute.xlu0 %52
    %54 = vrot.lane.b32.xlu0 %v43, 8
    %v55 = vpop.permute.xlu0 %54
    %56 = vrot.lane.b32.xlu0 %v38, 120
    %v57 = vpop.permute.xlu0 %56
    %58 = vrot.lane.b32.xlu0 %v39, 120
    %v59 = vpop.permute.xlu0 %58
    %60 = vrot.lane.b32.xlu0 %v40, 120
    %v61 = vpop.permute.xlu0 %60
    %62 = vrot.lane.b32.xlu0 %v41, 120
    %v63 = vpop.permute.xlu0 %62
    %64 = vrot.lane.b32.xlu0 %v42, 120
    %v65 = vpop.permute.xlu0 %64
    %66 = vrot.lane.b32.xlu0 %v43, 120
    %v67 = vpop.permute.xlu0 %66
    %v68 = vld [vmem:[%s1] sm:$0x7]
    %v69 = vld [vmem:[%s1 + $0x4] sm:$0x7]
    %v70 = vld [vmem:[%s1 + $0x8] sm:$0x7]
    %v71 = vlaneseq
    %v72 = vshrl.u32 %v71, 7
    %v73 = vsub.s32 0, %v72
    %v74 = vrot.slane %v68, %v73
    %v75 = vmul.f32 %v45, %v74
    %v76 = vmul.f32 %v47, %v74
    %v77 = vmul.f32 %v51, %v74
    %v78 = vmul.f32 %v53, %v74
    %v79 = vlaneseq
    %v80 = vshrl.u32 %v79, 7
    %v81 = vsub.s32 1, %v80
    %v82 = vrot.slane %v68, %v81
    %v83 = vmul.f32 %v38, %v82
    %v84 = vmul.f32 %v39, %v82
    %v85 = vmul.f32 %v41, %v82
    %v86 = vmul.f32 %v42, %v82
    %v87 = vadd.f32 %v75, %v83
    %v88 = vadd.f32 %v76, %v84
    %v89 = vadd.f32 %v77, %v85
    %v90 = vadd.f32 %v78, %v86
    %v91 = vlaneseq
    %v92 = vshrl.u32 %v91, 7
    %v93 = vsub.s32 2, %v92
    %v94 = vrot.slane %v68, %v93
    %v95 = vmul.f32 %v57, %v94
    %v96 = vmul.f32 %v59, %v94
    %v97 = vmul.f32 %v63, %v94
    %v98 = vmul.f32 %v65, %v94
    %v99 = vadd.f32 %v87, %v95
    %v100 = vadd.f32 %v88, %v96
    %v101 = vadd.f32 %v89, %v97
    %v102 = vadd.f32 %v90, %v98
    %v103 = vlaneseq
    %v104 = vshrl.u32 %v103, 7
    %v105 = vsub.s32 0, %v104
    %v106 = vrot.slane %v69, %v105
    %v107 = vmul.f32 %v45, %v106
    %v108 = vmul.f32 %v47, %v106
    %v109 = vmul.f32 %v49, %v106
    %v110 = vmul.f32 %v51, %v106
    %v111 = vmul.f32 %v53, %v106
    %v112 = vmul.f32 %v55, %v106
    %vm119 = vcmask 1046528
    %v120 = vrot.slane %v107, 1
    %v121 = vrot.slane %v108, 1
    %v122 = vsel %vm119, %v120, %v121
    %v123 = vrot.slane %v109, 1
    %v124 = vsel %vm119, %v121, %v123
    %v125 = vrot.slane %v110, 1
    %v126 = vrot.slane %v111, 1
    %v127 = vsel %vm119, %v125, %v126
    %v128 = vrot.slane %v112, 1
    %v129 = vsel %vm119, %v126, %v128
    %v134 = vadd.f32 %v99, %v122
    %v135 = vadd.f32 %v100, %v124
    %v136 = vadd.f32 %v101, %v127
    %v137 = vadd.f32 %v102, %v129
    %v138 = vlaneseq
    %v139 = vshrl.u32 %v138, 7
    %v140 = vsub.s32 1, %v139
    %v141 = vrot.slane %v69, %v140
    %v142 = vmul.f32 %v38, %v141
    %v143 = vmul.f32 %v39, %v141
    %v144 = vmul.f32 %v40, %v141
    %v145 = vmul.f32 %v41, %v141
    %v146 = vmul.f32 %v42, %v141
    %v147 = vmul.f32 %v43, %v141
    %v154 = vrot.slane %v142, 1
    %v155 = vrot.slane %v143, 1
    %v156 = vsel %vm119, %v154, %v155
    %v157 = vrot.slane %v144, 1
    %v158 = vsel %vm119, %v155, %v157
    %v159 = vrot.slane %v145, 1
    %v160 = vrot.slane %v146, 1
    %v161 = vsel %vm119, %v159, %v160
    %v162 = vrot.slane %v147, 1
    %v163 = vsel %vm119, %v160, %v162
    %v168 = vadd.f32 %v134, %v156
    %v169 = vadd.f32 %v135, %v158
    %v170 = vadd.f32 %v136, %v161
    %v171 = vadd.f32 %v137, %v163
    %v172 = vlaneseq
    %v173 = vshrl.u32 %v172, 7
    %v174 = vsub.s32 2, %v173
    %v175 = vrot.slane %v69, %v174
    %v176 = vmul.f32 %v57, %v175
    %v177 = vmul.f32 %v59, %v175
    %v178 = vmul.f32 %v61, %v175
    %v179 = vmul.f32 %v63, %v175
    %v180 = vmul.f32 %v65, %v175
    %v181 = vmul.f32 %v67, %v175
    %v188 = vrot.slane %v176, 1
    %v189 = vrot.slane %v177, 1
    %v190 = vsel %vm119, %v188, %v189
    %v191 = vrot.slane %v178, 1
    %v192 = vsel %vm119, %v189, %v191
    %v193 = vrot.slane %v179, 1
    %v194 = vrot.slane %v180, 1
    %v195 = vsel %vm119, %v193, %v194
    %v196 = vrot.slane %v181, 1
    %v197 = vsel %vm119, %v194, %v196
    %v202 = vadd.f32 %v168, %v190
    %v203 = vadd.f32 %v169, %v192
    %v204 = vadd.f32 %v170, %v195
    %v205 = vadd.f32 %v171, %v197
    %v206 = vlaneseq
    %v207 = vshrl.u32 %v206, 7
    %v208 = vsub.s32 0, %v207
    %v209 = vrot.slane %v70, %v208
    %v210 = vmul.f32 %v45, %v209
    %v211 = vmul.f32 %v47, %v209
    %v212 = vmul.f32 %v49, %v209
    %v213 = vmul.f32 %v51, %v209
    %v214 = vmul.f32 %v53, %v209
    %v215 = vmul.f32 %v55, %v209
    %vm222 = vcmask 1045504
    %v223 = vrot.slane %v210, 2
    %v224 = vrot.slane %v211, 2
    %v225 = vsel %vm222, %v223, %v224
    %v226 = vrot.slane %v212, 2
    %v227 = vsel %vm222, %v224, %v226
    %v228 = vrot.slane %v213, 2
    %v229 = vrot.slane %v214, 2
    %v230 = vsel %vm222, %v228, %v229
    %v231 = vrot.slane %v215, 2
    %v232 = vsel %vm222, %v229, %v231
    %v237 = vadd.f32 %v202, %v225
    %v238 = vadd.f32 %v203, %v227
    %v239 = vadd.f32 %v204, %v230
    %v240 = vadd.f32 %v205, %v232
    %v241 = vlaneseq
    %v242 = vshrl.u32 %v241, 7
    %v243 = vsub.s32 1, %v242
    %v244 = vrot.slane %v70, %v243
    %v245 = vmul.f32 %v38, %v244
    %v246 = vmul.f32 %v39, %v244
    %v247 = vmul.f32 %v40, %v244
    %v248 = vmul.f32 %v41, %v244
    %v249 = vmul.f32 %v42, %v244
    %v250 = vmul.f32 %v43, %v244
    %v257 = vrot.slane %v245, 2
    %v258 = vrot.slane %v246, 2
    %v259 = vsel %vm222, %v257, %v258
    %v260 = vrot.slane %v247, 2
    %v261 = vsel %vm222, %v258, %v260
    %v262 = vrot.slane %v248, 2
    %v263 = vrot.slane %v249, 2
    %v264 = vsel %vm222, %v262, %v263
    %v265 = vrot.slane %v250, 2
    %v266 = vsel %vm222, %v263, %v265
    %v271 = vadd.f32 %v237, %v259
    %v272 = vadd.f32 %v238, %v261
    %v273 = vadd.f32 %v239, %v264
    %v274 = vadd.f32 %v240, %v266
    %v275 = vlaneseq
    %v276 = vshrl.u32 %v275, 7
    %v277 = vsub.s32 2, %v276
    %v278 = vrot.slane %v70, %v277
    %v279 = vmul.f32 %v57, %v278
    %v280 = vmul.f32 %v59, %v278
    %v281 = vmul.f32 %v61, %v278
    %v282 = vmul.f32 %v63, %v278
    %v283 = vmul.f32 %v65, %v278
    %v284 = vmul.f32 %v67, %v278
    %v291 = vrot.slane %v279, 2
    %v292 = vrot.slane %v280, 2
    %v293 = vsel %vm222, %v291, %v292
    %v294 = vrot.slane %v281, 2
    %v295 = vsel %vm222, %v292, %v294
    %v296 = vrot.slane %v282, 2
    %v297 = vrot.slane %v283, 2
    %v298 = vsel %vm222, %v296, %v297
    %v299 = vrot.slane %v284, 2
    %v300 = vsel %vm222, %v297, %v299
    %v305 = vadd.f32 %v271, %v293
    %v306 = vadd.f32 %v272, %v295
    %v307 = vadd.f32 %v273, %v298
    %v308 = vadd.f32 %v274, %v300
    %v309 = vld [vmem:[%s2] sm:$0x1]
    %v311 = vlaneseq
    %v312 = vshrl.u32 %v311, 7
    %v313 = vsub.s32 0, %v312
    %v314 = vrot.slane %v309, %v313
    %v316 = vadd.f32 %v305, %v314
    %v317 = vadd.f32 %v306, %v314
    %v318 = vadd.f32 %v307, %v314
    %v319 = vadd.f32 %v308, %v314
    %v320 = vmax.f32 %v316, 0.0
    %v321 = vmax.f32 %v317, 0.0
    %v322 = vmax.f32 %v318, 0.0
    %v323 = vmax.f32 %v319, 0.0
    %v324 = vpack.c.bf16 %v321, %v320
    %v325 = vpack.c.bf16 %v323, %v322
    %v326 = vld [vmem:[#allocation2] sm:$0xff]
    %v327 = vld [vmem:[#allocation2 + $0x8] sm:$0xff]
    %v328 = vld [vmem:[#allocation2 + $0x10] sm:$0xff]
    %v329 = vld [vmem:[#allocation2 + $0x18] sm:$0xff]
    %v330 = vld [vmem:[#allocation2 + $0x20] sm:$0xff]
    %v331 = vld [vmem:[#allocation2 + $0x28] sm:$0xff]
    %v332 = vld [vmem:[#allocation2 + $0x30] sm:$0xff]
    %v333 = vld [vmem:[#allocation2 + $0x38] sm:$0xff]
    %v334 = vld [vmem:[#allocation2 + $0x40] sm:$0xff]
    %v335 = vld [vmem:[#allocation2 + $0x48] sm:$0xff]
    %v336 = vld [vmem:[#allocation2 + $0x50] sm:$0xff]
    %v337 = vld [vmem:[#allocation2 + $0x58] sm:$0xff]
    %v338 = vld [vmem:[#allocation2 + $0x60] sm:$0xff]
    %v339 = vld [vmem:[#allocation2 + $0x68] sm:$0xff]
    %v340 = vld [vmem:[#allocation2 + $0x70] sm:$0xff]
    %v341 = vld [vmem:[#allocation2 + $0x78] sm:$0xff]
    %v342 = vld [vmem:[%s4] sm:$0x3]
    %v344 = vlaneseq
    %v345 = vshrl.u32 %v344, 7
    %v346 = vsub.s32 0, %v345
    %v347 = vrot.slane %v342, %v346
    %v348 = vlaneseq
    %v349 = vshrl.u32 %v348, 7
    %v350 = vsub.s32 1, %v349
    %v351 = vrot.slane %v342, %v350
    %v370 = vunpack.c.l.b16 %v326
    %v371 = vunpack.c.h.b16 %v326
    %v372 = vunpack.c.l.b16 %v327
    %v373 = vunpack.c.h.b16 %v327
    %v374 = vunpack.c.l.b16 %v328
    %v375 = vunpack.c.h.b16 %v328
    %v376 = vunpack.c.l.b16 %v329
    %v377 = vunpack.c.h.b16 %v329
    %v378 = vunpack.c.l.b16 %v330
    %v379 = vunpack.c.h.b16 %v330
    %v380 = vunpack.c.l.b16 %v331
    %v381 = vunpack.c.h.b16 %v331
    %v382 = vunpack.c.l.b16 %v332
    %v383 = vunpack.c.h.b16 %v332
    %v384 = vunpack.c.l.b16 %v333
    %v385 = vunpack.c.h.b16 %v333
    %v386 = vunpack.c.l.b16 %v334
    %v387 = vunpack.c.h.b16 %v334
    %v388 = vunpack.c.l.b16 %v335
    %v389 = vunpack.c.h.b16 %v335
    %v390 = vunpack.c.l.b16 %v336
    %v391 = vunpack.c.h.b16 %v336
    %v392 = vunpack.c.l.b16 %v337
    %v393 = vunpack.c.h.b16 %v337
    %v394 = vunpack.c.l.b16 %v338
    %v395 = vunpack.c.h.b16 %v338
    %v396 = vunpack.c.l.b16 %v339
    %v397 = vunpack.c.h.b16 %v339
    %v398 = vunpack.c.l.b16 %v340
    %v399 = vunpack.c.h.b16 %v340
    %v400 = vunpack.c.l.b16 %v341
    %v401 = vunpack.c.h.b16 %v341
    %v402 = vpack.c.b16 %v372, %v370
    %v403 = vpack.c.b16 %v373, %v371
    %v404 = vpack.c.b16 %v376, %v374
    %v405 = vpack.c.b16 %v377, %v375
    %v406 = vpack.c.b16 %v380, %v378
    %v407 = vpack.c.b16 %v381, %v379
    %v408 = vpack.c.b16 %v384, %v382
    %v409 = vpack.c.b16 %v385, %v383
    %v410 = vpack.c.b16 %v388, %v386
    %v411 = vpack.c.b16 %v389, %v387
    %v412 = vpack.c.b16 %v392, %v390
    %v413 = vpack.c.b16 %v393, %v391
    %v414 = vpack.c.b16 %v396, %v394
    %v415 = vpack.c.b16 %v397, %v395
    %v416 = vpack.c.b16 %v400, %v398
    %v417 = vpack.c.b16 %v401, %v399
    %434 = vmatprep.subr.bf16.mxu0 %v403
    %435 = vmatpush1.bf16.msra.mxu0 %v402
    %436 = vmatprep.subr.bf16.mxu0 %v405
    %437 = vmatpush1.bf16.msra.mxu0 %v404
    %438 = vmatprep.subr.bf16.mxu0 %v407
    %439 = vmatpush1.bf16.msra.mxu0 %v406
    %440 = vmatprep.subr.bf16.mxu0 %v409
    %441 = vmatpush1.bf16.msra.mxu0 %v408
    %442 = vmatprep.subr.bf16.mxu0 %v411
    %443 = vmatpush1.bf16.msra.mxu0 %v410
    %444 = vmatprep.subr.bf16.mxu0 %v413
    %445 = vmatpush1.bf16.msra.mxu0 %v412
    %446 = vmatprep.subr.bf16.mxu0 %v415
    %447 = vmatpush1.bf16.msra.mxu0 %v414
    %448 = vmatprep.subr.bf16.mxu0 %v417
    %449 = vmatpush1.bf16.msra.mxu0 %v416
    %450 = vmatprep.subr.bf16.mxu0 0
    %451 = vmatpush1.bf16.msra.mxu0 0
    %452 = vmatprep.subr.bf16.mxu0 0
    %453 = vmatpush1.bf16.msra.mxu0 0
    %454 = vmatprep.subr.bf16.mxu0 0
    %455 = vmatpush1.bf16.msra.mxu0 0
    %456 = vmatprep.subr.bf16.mxu0 0
    %457 = vmatpush1.bf16.msra.mxu0 0
    %458 = vmatprep.subr.bf16.mxu0 0
    %459 = vmatpush1.bf16.msra.mxu0 0
    %460 = vmatprep.subr.bf16.mxu0 0
    %461 = vmatpush1.bf16.msra.mxu0 0
    %462 = vmatprep.subr.bf16.mxu0 0
    %463 = vmatpush1.bf16.msra.mxu0 0
    %464 = vmatprep.subr.bf16.mxu0 0
    %465 = vmatpush1.bf16.msra.mxu0 0
    %466 = vmatprep.mubr.bf16.mxu0 0
    %467 = vmatmul.mubr.bf16.gmra.mrb[0].mxu0 %v324
    %v468 = vpop.f32.mrb[0].mxu0
    %v469 = vadd.f32 %v347, %v468
    %v470 = vpop.f32.mrb[0].mxu0
    %v471 = vadd.f32 %v351, %v470
    %v472 = vpop.f32.mrb[0].mxu0
    %v473 = vadd.f32 %v347, %v472
    %v474 = vpop.f32.mrb[0].mxu0
    %v475 = vadd.f32 %v351, %v474
    %476 = vmatprep.mubr.bf16.mxu0 0
    %477 = vmatmul.mubr.bf16.gmra.mrb[0].mxu0 %v325
    %v478 = vpop.f32.mrb[0].mxu0
    %v479 = vadd.f32 %v347, %v478
    %v480 = vpop.f32.mrb[0].mxu0
    %v481 = vadd.f32 %v351, %v480
    %v482 = vpop.f32.mrb[0].mxu0
    %v483 = vadd.f32 %v347, %v482
    %v484 = vpop.f32.mrb[0].mxu0
    %v485 = vadd.f32 %v351, %v484
    %486 = vdwg.mxu0
    %v487 = vmax.f32 %v469, 0.0
    %v488 = vmax.f32 %v471, 0.0
    %v489 = vmax.f32 %v473, 0.0
    %v490 = vmax.f32 %v475, 0.0
    %v491 = vmax.f32 %v479, 0.0
    %v492 = vmax.f32 %v481, 0.0
    %v493 = vmax.f32 %v483, 0.0
    %v494 = vmax.f32 %v485, 0.0
    %495 = vst [vmem:[#allocation5] sm:$0xff] %v487
    %496 = vst [vmem:[#allocation5 + $0x8] sm:$0xff] %v488
    %497 = vst [vmem:[#allocation5 + $0x10] sm:$0xff] %v489
    %498 = vst [vmem:[#allocation5 + $0x18] sm:$0xff] %v490
    %499 = vst [vmem:[#allocation5 + $0x20] sm:$0xff] %v491
    %500 = vst [vmem:[#allocation5 + $0x28] sm:$0xff] %v492
    %501 = vst [vmem:[#allocation5 + $0x30] sm:$0xff] %v493
    %502 = vst [vmem:[#allocation5 + $0x38] sm:$0xff] %v494
    // Predicated region
    $region26: #{tpu_custom_call.1} parent=1 // pred_check
      _
    $region27: #{tpu_custom_call.1} parent=1 // pred_check_branch
      %504 = sbr.rel (0) target = $region29
    $region28: #{tpu_custom_call.1} parent=1 // pred_region
      %s506 = ssub.s32 1024, 1024
      %507 = vsyncadd [#allocation4], %s506
      %s508 = sshll.u32 [#allocation5], 4
      %s509 = int_to_ptr.vmem [resolvable:$true] %s508
      %514 = dma.vmem_to_hbm [thread:$0]  %s509, 1024, %s5, [#allocation4], 256, 256, 16
    $region29: #{tpu_custom_call.1} parent=1 // pred_fallthru
      _
    // Predicated region
    $region30: #{tpu_custom_call.1} parent=1 // pred_check
      _
    $region31: #{tpu_custom_call.1} parent=1 // pred_check_branch
      %516 = sbr.rel (0) target = $region33
    $region32: #{tpu_custom_call.1} parent=1 // pred_region
      %517 = dma.done [#allocation4], 1024
    $region33: #{tpu_custom_call.1} parent=1 // pred_fallthru
      _
    %518 = vsyncpa [#allocation3], 1
    %519 = vsyncpa [#allocation4], 1

</llo_original>
